<compile_context>
chip_gen: v5e
topology: v5e:2x2
jax: 0.10.0
libtpu: 0.0.40
codegen_flags: <defaults>
</compile_context>

<pallas_src>
import jax
import jax.numpy as jnp
from jax.experimental import pallas as pl
from jax.experimental.pallas import tpu as pltpu


def _round_up(x, m):
    return ((x + m - 1) // m) * m


def gcn_kernel(a_ref, h_ref, o_ref):
    # a_ref: (tm, tk)      f32 tile of A_norm (cast to bf16 here, per tile)
    # h_ref: (n_k, d_pad)  bf16 H = X @ W^T, full array, VMEM-resident
    # o_ref: (tm, d_pad)   f32 output tile; doubles as the accumulator across k
    k = pl.program_id(1)
    tk = a_ref.shape[1]

    @pl.when(k == 0)
    def _():
        o_ref[...] = jnp.zeros_like(o_ref)

    start = pl.multiple_of(k * tk, tk)
    a_t = a_ref[...].astype(jnp.bfloat16)          # per-tile cast (hidden under DMA)
    h_t = h_ref[pl.ds(start, tk), :]               # slice of the resident H
    o_ref[...] += jnp.dot(a_t, h_t, preferred_element_type=jnp.float32)

    @pl.when(k == pl.num_programs(1) - 1)
    def _():
        o_ref[...] = jnp.maximum(o_ref[...], 0.0)  # relu in place, f32 stays exact


def gcn_forward(a_norm, x, w, *, tm=512, tk=1024, keep_padded=False):
    """Z = relu(A_norm @ X @ W^T); w is the nn.Linear weight of shape (dim_out, dim_in)."""
    n = a_norm.shape[0]
    dim_out = w.shape[0]

    # Prologue (tiny, plain JAX): H = X @ W^T in f32, then bf16 + lane-dense pad.
    h = jnp.dot(x.astype(jnp.float32), w.astype(jnp.float32).T)      # (n, dim_out)
    d_pad = max(128, _round_up(dim_out, 128))
    if d_pad != dim_out:
        h = jnp.pad(h, ((0, 0), (0, d_pad - dim_out)))
    h = h.astype(jnp.bfloat16)

    # Tile sizes must satisfy (8, 128) on the last two block dims.
    tm = min(tm, _round_up(n, 8))
    tk = min(tk, _round_up(n, 128))

    # Zero-pad to tile multiples only when needed (zeros contribute nothing).
    n_rows = _round_up(n, tm)
    n_k = _round_up(n, tk)
    a_s = a_norm
    if (n_rows, n_k) != a_norm.shape:
        a_s = jnp.pad(a_norm, ((0, n_rows - n), (0, n_k - n)))
    if n_k != h.shape[0]:
        h = jnp.pad(h, ((0, n_k - h.shape[0]), (0, 0)))

    grid = (n_rows // tm, n_k // tk)  # (row tiles -> "parallel", K -> "arbitrary")

    a_bytes = jnp.dtype(a_s.dtype).itemsize
    bytes_accessed = (n_rows * n_k * a_bytes      # A streamed once (dominant)
                      + n_k * d_pad * 2           # H fetched once (VMEM-resident)
                      + n_rows * d_pad * 4)       # output writeback
    cost = pl.CostEstimate(flops=2 * n_rows * n_k * d_pad, transcendentals=0,
                           bytes_accessed=int(bytes_accessed))

    # VMEM: A double-buffered + resident H (assume default 2x buffering) + output
    # tile double-buffered, plus headroom.  Well inside 64 MiB/TC on v7x.
    vmem_needed = (2 * tm * tk * a_bytes
                   + 2 * n_k * d_pad * 2
                   + 2 * tm * d_pad * 4)
    vmem_limit = int(min(100 * 2**20, max(32 * 2**20, vmem_needed + 4 * 2**20)))

    out = pl.pallas_call(
        gcn_kernel,
        out_shape=jax.ShapeDtypeStruct((n_rows, d_pad), jnp.float32),
        grid_spec=pltpu.PrefetchScalarGridSpec(
            num_scalar_prefetch=0,
            grid=grid,
            in_specs=[
                pl.BlockSpec((tm, tk), lambda i, k: (i, k)),       # A: f32 stream
                # H: full array, constant index -> DMA'd once, stays in VMEM.
                # TODO(synk): pipeline_mode=pl.Buffered(1) on H for very large n
                # to avoid the default 2x buffering of this resident block.
                pl.BlockSpec((n_k, d_pad), lambda i, k: (0, 0)),
            ],
            out_specs=pl.BlockSpec((tm, d_pad), lambda i, k: (i, 0)),
        ),
        compiler_params=pltpu.CompilerParams(
            dimension_semantics=("parallel", "arbitrary"),
            vmem_limit_bytes=vmem_limit,
        ),
        cost_estimate=cost,
    )(a_s, h)

    if keep_padded:
        return out          # (n_rows, d_pad) padded layout for a following layer
    return out[:n, :dim_out]


if __name__ == "__main__":
    # Small, deterministic example: N nodes, dim_in -> dim_out GCN layer.
    N, DIM_IN, DIM_OUT = 256, 64, 32

    key = jax.random.PRNGKey(0)
    k_a, k_x, k_w = jax.random.split(key, 3)

    # Synthetic row-normalized dense adjacency.
    a_raw = jax.random.uniform(k_a, (N, N), dtype=jnp.float32)
    a_norm = a_raw / jnp.sum(a_raw, axis=1, keepdims=True)

    # Node features.
    x = jax.random.normal(k_x, (N, DIM_IN), dtype=jnp.float32)

    # nn.Linear(dim_in, dim_out, bias=False) weight, shape (dim_out, dim_in).
    bound = 1.0 / jnp.sqrt(jnp.float32(DIM_IN))
    w = jax.random.uniform(k_w, (DIM_OUT, DIM_IN), dtype=jnp.float32,
                           minval=-bound, maxval=bound)

    # Small tiles so the example exercises both grid axes (2x2 grid), the
    # in-kernel H slicing and the accumulator init/finalize phases.
    out = gcn_forward(a_norm, x, w, tm=128, tk=128)
    out = jax.block_until_ready(out)
    assert out.shape == (N, DIM_OUT)

    # Reference 1: same math as the kernel (bf16 operands, f32 accumulation).
    h_ref = x @ w.T
    ref_bf16 = jnp.maximum(
        jnp.dot(a_norm.astype(jnp.bfloat16).astype(jnp.float32),
                h_ref.astype(jnp.bfloat16).astype(jnp.float32)), 0.0)
    assert jnp.allclose(out, ref_bf16, atol=2e-3, rtol=2e-3), \
        "mismatch vs bf16-stream reference"

    # Reference 2: exact PyTorch forward semantics in f32 (loose tolerance for
    # the bf16 rounding of the streamed operands).
    ref_f32 = jnp.maximum((a_norm @ x) @ w.T, 0.0)
    assert jnp.allclose(out, ref_f32, atol=1e-2, rtol=5e-2), \
        "mismatch vs f32 reference"

    print("KERNEL_OK")
</pallas_src>

<mosaic_0001>
module attributes {stable_mosaic.version = 11 : i64} {
  func.func @gcn_kernel(%arg0: i32, %arg1: i32, %arg2: memref<128x128xf32, #tpu.memory_space<vmem>>, %arg3: memref<256x128xbf16, #tpu.memory_space<vmem>>, %arg4: memref<128x128xf32, #tpu.memory_space<vmem>>) attributes {dimension_semantics = [#tpu.dimension_semantics<parallel>, #tpu.dimension_semantics<arbitrary>], iteration_bounds = array<i64: 2, 2>, scalar_prefetch = 0 : i64, scratch_operands = 0 : i64, tpu.core_type = #tpu.core_type<tc>, window_params = [{transform_indices = @transform_0, window_bounds = array<i64: 128, 128>}, {pipeline_mode = #tpu.pipeline_mode<synchronous>, transform_indices = @transform_1, window_bounds = array<i64: 256, 128>}, {transform_indices = @transform_2, window_bounds = array<i64: 128, 128>}]} {
    %c0_i32 = arith.constant 0 : i32
    %0 = arith.cmpi eq, %arg1, %c0_i32 : i32
    %1 = arith.extui %0 : i1 to i32
    %c0_i32_0 = arith.constant 0 : i32
    %2 = arith.cmpi ne, %1, %c0_i32_0 : i32
    scf.if %2 {
      %cst_8 = arith.constant 0.000000e+00 : f32
      %16 = vector.broadcast %cst_8 : f32 to vector<128x128xf32>
      %c0_9 = arith.constant 0 : index
      %c0_10 = arith.constant 0 : index
      %17 = vector.load %arg4[%c0_9, %c0_10] : memref<128x128xf32, #tpu.memory_space<vmem>>, vector<128x128xf32>
      tpu.vector_store %arg4[%c0_9, %c0_10], %16 {strides = array<i32>} : memref<128x128xf32, #tpu.memory_space<vmem>>, vector<128x128xf32>,
    } else {
    }
    %c128_i32 = arith.constant 128 : i32
    %3 = arith.muli %arg1, %c128_i32 : i32
    %4 = tpu.assume_multiple %3, 128 : i32
    %c0 = arith.constant 0 : index
    %c0_1 = arith.constant 0 : index
    %5 = vector.load %arg2[%c0, %c0_1] : memref<128x128xf32, #tpu.memory_space<vmem>>, vector<128x128xf32>
    %6 = arith.truncf %5 : vector<128x128xf32> to vector<128x128xbf16>
    %7 = arith.index_cast %4 : i32 to index
    %c0_2 = arith.constant 0 : index
    %8 = vector.load %arg3[%7, %c0_2] : memref<256x128xbf16, #tpu.memory_space<vmem>>, vector<128x128xbf16>
    %c0_3 = arith.constant 0 : index
    %c0_4 = arith.constant 0 : index
    %9 = vector.load %arg4[%c0_3, %c0_4] : memref<128x128xf32, #tpu.memory_space<vmem>>, vector<128x128xf32>
    %cst = arith.constant dense<0.000000e+00> : vector<128x128xf32>
    %10 = tpu.matmul %6, %8, %cst {dimension_numbers = #tpu.dot_dimension_numbers<[1], [0], [0], [1], [0, 0, 1, 1], [], []>} : vector<128x128xbf16>, vector<128x128xbf16>, vector<128x128xf32> -> vector<128x128xf32>
    %11 = arith.addf %9, %10 : vector<128x128xf32>
    %c0_5 = arith.constant 0 : index
    %c0_6 = arith.constant 0 : index
    %12 = vector.load %arg4[%c0_5, %c0_6] : memref<128x128xf32, #tpu.memory_space<vmem>>, vector<128x128xf32>
    tpu.vector_store %arg4[%c0_5, %c0_6], %11 {strides = array<i32>} : memref<128x128xf32, #tpu.memory_space<vmem>>, vector<128x128xf32>,
    %c1_i32 = arith.constant 1 : i32
    %13 = arith.cmpi eq, %arg1, %c1_i32 : i32
    %14 = arith.extui %13 : i1 to i32
    %c0_i32_7 = arith.constant 0 : i32
    %15 = arith.cmpi ne, %14, %c0_i32_7 : i32
    scf.if %15 {
      %c0_8 = arith.constant 0 : index
      %c0_9 = arith.constant 0 : index
      %16 = vector.load %arg4[%c0_8, %c0_9] : memref<128x128xf32, #tpu.memory_space<vmem>>, vector<128x128xf32>
      %cst_10 = arith.constant 0.000000e+00 : f32
      %17 = vector.broadcast %cst_10 : f32 to vector<128x128xf32>
      %18 = arith.maximumf %16, %17 : vector<128x128xf32>
      %c0_11 = arith.constant 0 : index
      %c0_12 = arith.constant 0 : index
      %19 = vector.load %arg4[%c0_11, %c0_12] : memref<128x128xf32, #tpu.memory_space<vmem>>, vector<128x128xf32>
      tpu.vector_store %arg4[%c0_11, %c0_12], %18 {strides = array<i32>} : memref<128x128xf32, #tpu.memory_space<vmem>>, vector<128x128xf32>,
    } else {
    }
    return
  }
  func.func @transform_0(%arg0: i32, %arg1: i32) -> (i32, i32) {
    %c0_i32 = arith.constant 0 : i32
    return %arg0, %arg1 : i32, i32
  }
  func.func @transform_1(%arg0: i32, %arg1: i32) -> (i32, i32) {
    %c0_i32 = arith.constant 0 : i32
    %c0_i32_0 = arith.constant 0 : i32
    %c0_i32_1 = arith.constant 0 : i32
    return %c0_i32, %c0_i32_0 : i32, i32
  }
  func.func @transform_2(%arg0: i32, %arg1: i32) -> (i32, i32) {
    %c0_i32 = arith.constant 0 : i32
    %c0_i32_0 = arith.constant 0 : i32
    return %arg0, %c0_i32 : i32, i32
  }
}

</mosaic_0001>

<llo_original>
// kernel: tpu_custom_call.1
$region0: #{tpu_custom_call.1}
  #allocation0 [shape = 'u32[]', space=smem, size = 0x4, offset = 0x4, fixed_abs, tag = 'smem constant byte address 0x4 - core index']
  #allocation1 [shape = 'u32[72,128]{1,0:T(1,128)}', space=vmem, size = 0x9000, scoped, tag = 'internal scratch']
  %s0 = inlined_call_operand.hbm [shape: f32[256,256], index: 0, kind: input, shape index: {}]
  %s1 = inlined_call_operand.hbm [shape: bf16[256,128], index: 1, kind: input, shape index: {}]
  %s2 = inlined_call_operand.hbm [shape: f32[256,128], index: 2, kind: output, shape index: {}]
  %s3 = sld [smem:[#allocation0]]
  $region57: #{tpu_custom_call.1} parent=0
    _
  %s5 = ssub.s32 1, %s3
  %s6 = scalar_select 0, %s5, %s3
  $region1: #{tpu_custom_call.1} parent=0
    #allocation2 [shape = 'u8[131072]{0}', space=vmem, size = 0x20000, scoped, tag = 'input window, operand 0']
    #allocation3 [shape = 's32[2]{0}', space=sflag, size = 0x8, scoped, tag = 'scoped memory for tpu_custom_call.1']
    #allocation4 [shape = 's32[2]{0}', space=sflag, size = 0x8, scoped, tag = 'scoped memory for tpu_custom_call.1']
    #allocation5 [shape = 'u8[65536]{0}', space=vmem, size = 0x10000, scoped, tag = 'input window, operand 1, single buffered']
    #allocation6 [shape = 's32[1]{0}', space=sflag, size = 0x4, scoped, tag = 'scoped memory for tpu_custom_call.1']
    #allocation7 [shape = 'u8[131072]{0}', space=vmem, size = 0x20000, scoped, tag = 'output window, operand 0']
    %7 = vsyncpa [#allocation3], 0
    %s8 = scalar_lea.sflag [#allocation3], 1
    %9 = vsyncpa %s8, 0
    %10 = vsyncpa [#allocation6], 0
    %11 = vsyncpa [#allocation4], 0
    %s12 = scalar_lea.sflag [#allocation4], 1
    %13 = vsyncpa %s12, 0
    loop: start=0, step=1, limit=6
    $region2: #{tpu_custom_call.1} parent=1 // loop_pre_header
      _
    $region3: #{tpu_custom_call.1} parent=1 // loop_header
      %s15 = sphi 0, %s19
      %p16 = scmp.ge.s32.totalorder %s15, 6
      %s22 = sphi 0, %s34
      %s23 = sphi 0, %s30
      %s24 = sphi 0, %s22
      %s25 = sphi 0, %s23
      %s26 = sphi 0, %s24
      %s27 = sphi 0, %s25
      %s39 = sphi 0, %s41
      %s42 = sphi 0, %s39
      %s43 = sphi 0, %s42
      %s59 = sphi 0, %s43
      %s63 = sphi 0, %s63
      %s65 = sphi 0, %s63
      %s66 = sphi 0, %s65
      %s80 = sphi 0, %s66
      %s86 = sphi 0, %s88
      %s89 = sphi 0, %s86
      %s90 = sphi 0, %s89
      %s106 = sphi 0, %s90
    $region4: #{tpu_custom_call.1} parent=1 // loop_header_branch
      %18 = sbr.rel (%p16) target = $region8
    $region5: #{tpu_custom_call.1} parent=1 // loop_body
      %s20 = ssub.s32 %s15, 1
      %s21 = ssub.s32 %s15, 2
      %s28 = sadd.s32 1, %s23
      %p29 = scmp.ge.s32.totalorder %s28, 2
      %s30 = scalar_select %p29, 0, %s28
      %s31 = sadd.s32 1, %s22
      %s32 = scalar_select %p29, %s31, %s22
      %p33 = scmp.ge.s32.totalorder %s32, 2
      %s34 = scalar_select %p33, 0, %s32
      %s35 = ssub.s32 %s22, %s34
      %s36 = ssub.s32 %s23, %s30
      %s37 = sor.u32 %s35, %s36
      %p38 = scmp.eq.s32.totalorder %s37, 0
      %s40 = sadd.s32 %s39, 1
      %s41 = scalar_select %p38, %s39, %s40
      %p44 = pneg %p38
      %p45 = scmp.eq.s32.totalorder %s15, 3
      %p46 = por %p44, %p45
      %p47 = scmp.ne.s32.totalorder %s39, %s42
      %p48 = scmp.eq.s32.totalorder %s15, 0
      %p49 = por %p47, %p48
      %p50 = scmp.ne.s32.totalorder %s39, %s42
      %p51 = scmp.eq.s32.totalorder %s20, 3
      %p52 = por %p50, %p51
      %p53 = scmp.ne.s32.totalorder %s42, %s43
      %p54 = scmp.eq.s32.totalorder %s20, 0
      %p55 = por %p53, %p54
      %p56 = scmp.ne.s32.totalorder %s42, %s43
      %p57 = scmp.eq.s32.totalorder %s21, 3
      %p58 = por %p56, %p57
      %p60 = scmp.ne.s32.totalorder %s43, %s59
      %p61 = scmp.eq.s32.totalorder %s21, 0
      %p62 = por %p60, %p61
      %s64 = sadd.s32 %s63, 1
      %p67 = scmp.eq.s32.totalorder %s15, 3
      %p68 = scmp.ne.s32.totalorder %s63, %s65
      %p69 = scmp.eq.s32.totalorder %s15, 0
      %p70 = por %p68, %p69
      %p71 = scmp.ne.s32.totalorder %s63, %s65
      %p72 = scmp.eq.s32.totalorder %s20, 3
      %p73 = por %p71, %p72
      %p74 = scmp.ne.s32.totalorder %s65, %s66
      %p75 = scmp.eq.s32.totalorder %s20, 0
      %p76 = por %p74, %p75
      %p77 = scmp.ne.s32.totalorder %s65, %s66
      %p78 = scmp.eq.s32.totalorder %s21, 3
      %p79 = por %p77, %p78
      %p81 = scmp.ne.s32.totalorder %s66, %s80
      %p82 = scmp.eq.s32.totalorder %s21, 0
      %p83 = por %p81, %p82
      %s84 = ssub.s32 %s22, %s34
      %p85 = scmp.eq.s32.totalorder %s84, 0
      %s87 = sadd.s32 %s86, 1
      %s88 = scalar_select %p85, %s86, %s87
      %p91 = pneg %p85
      %p92 = scmp.eq.s32.totalorder %s15, 3
      %p93 = por %p91, %p92
      %p94 = scmp.ne.s32.totalorder %s86, %s89
      %p95 = scmp.eq.s32.totalorder %s15, 0
      %p96 = por %p94, %p95
      %p97 = scmp.ne.s32.totalorder %s86, %s89
      %p98 = scmp.eq.s32.totalorder %s20, 3
      %p99 = por %p97, %p98
      %p100 = scmp.ne.s32.totalorder %s89, %s90
      %p101 = scmp.eq.s32.totalorder %s20, 0
      %p102 = por %p100, %p101
      %p103 = scmp.ne.s32.totalorder %s89, %s90
      %p104 = scmp.eq.s32.totalorder %s21, 3
      %p105 = por %p103, %p104
      %p107 = scmp.ne.s32.totalorder %s90, %s106
      %p108 = scmp.eq.s32.totalorder %s21, 0
      %p109 = por %p107, %p108
      %p110 = scmp.le.s32.totalorder 1, %s15
      %p111 = scmp.lt.s32.totalorder %s15, 5
      %p112 = pnand %p110, %p111
      %p113 = pneg %p112
      // Predicated region
      $region9: #{tpu_custom_call.1} parent=5 // pred_check
        _
      $region10: #{tpu_custom_call.1} parent=5 // pred_check_branch
        %115 = sbr.rel (%p112) target = $region12
      $region11: #{tpu_custom_call.1} parent=5 // pred_region
        %s116 = ssub.s32 %s15, 1
        // Predicated region
        $region13: #{tpu_custom_call.1} parent=11 // pred_check
          %p117 = pneg %p76
        $region14: #{tpu_custom_call.1} parent=11 // pred_check_branch
          %119 = sbr.rel (%p117) target = $region16
        $region15: #{tpu_custom_call.1} parent=11 // pred_region
          %121 = vsyncadd [#allocation6], 0
          %s122 = sshll.u32 %s1, 4
          %s123 = int_to_ptr.hbm [resolvable:$true] %s122
          %s124 = sshll.u32 [#allocation5], 4
          %s125 = int_to_ptr.vmem [resolvable:$true] %s124
          %130 = dma.hbm_to_vmem [thread:$0]  %s123, 2048, %s125, [#allocation6], 64, 64, 4
        $region16: #{tpu_custom_call.1} parent=11 // pred_fallthru
          _
      $region12: #{tpu_custom_call.1} parent=5 // pred_fallthru
        _
      %p131 = scmp.lt.s32.totalorder %s15, 4
      // Predicated region
      $region17: #{tpu_custom_call.1} parent=5 // pred_check
        %p132 = pneg %p131
      $region18: #{tpu_custom_call.1} parent=5 // pred_check_branch
        %134 = sbr.rel (%p132) target = $region20
      $region19: #{tpu_custom_call.1} parent=5 // pred_region
        // Predicated region
        $region21: #{tpu_custom_call.1} parent=19 // pred_check
          %p135 = pneg %p49
        $region22: #{tpu_custom_call.1} parent=19 // pred_check_branch
          %137 = sbr.rel (%p135) target = $region24
        $region23: #{tpu_custom_call.1} parent=19 // pred_region
          %s138 = sand.u32 %s39, 1
          %s139 = scalar_lea.sflag [#allocation3], %s138
          %s140 = sand.u32 %s39, 1
          %s141 = smul.addr %s140, 128
          %s142 = scalar_lea.vmem [#allocation2], %s141
          %s143 = smul.u32 16, %s22
          %145 = vsyncadd %s139, 0
          %s146 = smul.addr %s143, 2
          %s147 = sadd.s32 %s23, %s146
          %s148 = smul.addr %s147, 8
          %s149 = scalar_lea.hbm %s0, %s148
          %s150 = sshll.u32 %s149, 4
          %s151 = int_to_ptr.hbm [resolvable:$true] %s150
          %s152 = sshll.u32 %s142, 4
          %s153 = int_to_ptr.vmem [resolvable:$true] %s152
          %158 = dma.hbm_to_vmem [thread:$0]  %s151, 2048, %s153, %s139, 256, 128, 8
        $region24: #{tpu_custom_call.1} parent=19 // pred_fallthru
          _
      $region20: #{tpu_custom_call.1} parent=5 // pred_fallthru
        _
      %p159 = scmp.le.s32.totalorder 1, %s15
      %p160 = scmp.lt.s32.totalorder %s15, 5
      %p161 = pnand %p159, %p160
      %p162 = pneg %p161
      // Predicated region
      $region25: #{tpu_custom_call.1} parent=5 // pred_check
        _
      $region26: #{tpu_custom_call.1} parent=5 // pred_check_branch
        %164 = sbr.rel (%p161) target = $region28
      $region27: #{tpu_custom_call.1} parent=5 // pred_region
        %s165 = ssub.s32 %s15, 1
        %s166 = sand.u32 %s42, 1
        %s167 = scalar_lea.sflag [#allocation3], %s166
        %s168 = sand.u32 %s42, 1
        %s169 = smul.addr %s168, 128
        %s170 = scalar_lea.vmem [#allocation2], %s169
        // Predicated region
        $region29: #{tpu_custom_call.1} parent=27 // pred_check
          %p171 = pneg %p55
        $region30: #{tpu_custom_call.1} parent=27 // pred_check_branch
          %173 = sbr.rel (%p171) target = $region32
        $region31: #{tpu_custom_call.1} parent=27 // pred_region
          %175 = dma.done %s167, 2048
        $region32: #{tpu_custom_call.1} parent=27 // pred_fallthru
          _
        // Predicated region
        $region33: #{tpu_custom_call.1} parent=27 // pred_check
          %p176 = pneg %p76
        $region34: #{tpu_custom_call.1} parent=27 // pred_check_branch
          %178 = sbr.rel (%p176) target = $region36
        $region35: #{tpu_custom_call.1} parent=27 // pred_region
          %180 = dma.done [#allocation6], 2048
        $region36: #{tpu_custom_call.1} parent=27 // pred_fallthru
          _
        %s181 = sand.u32 %s42, 1
        %s182 = scalar_lea.sflag [#allocation3], %s181
        %s183 = sand.u32 %s42, 1
        %s184 = smul.addr %s183, 128
        %s185 = scalar_lea.vmem [#allocation2], %s184
        %p186 = pneg %p55
        %p187 = pneg %p52
        %p188 = pneg %p76
        %p189 = pneg %p73
        %p190 = pneg %p102
        %p191 = pneg %p99
        %s192 = sand.u32 %s89, 1
        %s193 = scalar_lea.sflag [#allocation4], %s192
        %s194 = sand.u32 %s89, 1
        %s195 = smul.addr %s194, 128
        %s196 = scalar_lea.vmem [#allocation7], %s195
        %s197 = smul.u32 16, %s24
        %s198 = smul.u32 16, %s24
        %p199 = scmp.eq.s32.totalorder %s25, 0
        // Predicated region
        $region37: #{tpu_custom_call.1} parent=27 // pred_check
          %p200 = pneg %p199
        $region38: #{tpu_custom_call.1} parent=27 // pred_check_branch
          %202 = sbr.rel (%p200) target = $region40
        $region39: #{tpu_custom_call.1} parent=27 // pred_region
          %203 = vst [vmem:[%s196] sm:$0xff] 0.0
          %204 = vst [vmem:[%s196 + $0x8] sm:$0xff] 0.0
          %205 = vst [vmem:[%s196 + $0x10] sm:$0xff] 0.0
          %206 = vst [vmem:[%s196 + $0x18] sm:$0xff] 0.0
          %207 = vst [vmem:[%s196 + $0x20] sm:$0xff] 0.0
          %208 = vst [vmem:[%s196 + $0x28] sm:$0xff] 0.0
          %209 = vst [vmem:[%s196 + $0x30] sm:$0xff] 0.0
          %210 = vst [vmem:[%s196 + $0x38] sm:$0xff] 0.0
          %211 = vst [vmem:[%s196 + $0x40] sm:$0xff] 0.0
          %212 = vst [vmem:[%s196 + $0x48] sm:$0xff] 0.0
          %213 = vst [vmem:[%s196 + $0x50] sm:$0xff] 0.0
          %214 = vst [vmem:[%s196 + $0x58] sm:$0xff] 0.0
          %215 = vst [vmem:[%s196 + $0x60] sm:$0xff] 0.0
          %216 = vst [vmem:[%s196 + $0x68] sm:$0xff] 0.0
          %217 = vst [vmem:[%s196 + $0x70] sm:$0xff] 0.0
          %218 = vst [vmem:[%s196 + $0x78] sm:$0xff] 0.0
        $region40: #{tpu_custom_call.1} parent=27 // pred_fallthru
          _
        %s219 = smul.u32 %s25, 128
        %v220 = vld [vmem:[%s170] sm:$0xff]
        %v221 = vld [vmem:[%s170 + $0x8] sm:$0xff]
        %v222 = vld [vmem:[%s170 + $0x10] sm:$0xff]
        %v223 = vld [vmem:[%s170 + $0x18] sm:$0xff]
        %v224 = vld [vmem:[%s170 + $0x20] sm:$0xff]
        %v225 = vld [vmem:[%s170 + $0x28] sm:$0xff]
        %v226 = vld [vmem:[%s170 + $0x30] sm:$0xff]
        %v227 = vld [vmem:[%s170 + $0x38] sm:$0xff]
        %v228 = vld [vmem:[%s170 + $0x40] sm:$0xff]
        %v229 = vld [vmem:[%s170 + $0x48] sm:$0xff]
        %v230 = vld [vmem:[%s170 + $0x50] sm:$0xff]
        %v231 = vld [vmem:[%s170 + $0x58] sm:$0xff]
        %v232 = vld [vmem:[%s170 + $0x60] sm:$0xff]
        %v233 = vld [vmem:[%s170 + $0x68] sm:$0xff]
        %v234 = vld [vmem:[%s170 + $0x70] sm:$0xff]
        %v235 = vld [vmem:[%s170 + $0x78] sm:$0xff]
        %v236 = vpack.c.bf16 %v221, %v220
        %v237 = vpack.c.bf16 %v223, %v222
        %v238 = vpack.c.bf16 %v225, %v224
        %v239 = vpack.c.bf16 %v227, %v226
        %v240 = vpack.c.bf16 %v229, %v228
        %v241 = vpack.c.bf16 %v231, %v230
        %v242 = vpack.c.bf16 %v233, %v232
        %v243 = vpack.c.bf16 %v235, %v234
        %s244 = sshra.s32 %s219, 3
        %s245 = sand.u32 %s219, 7
        %s246 = smul.addr %s244, 4
        %s247 = scalar_lea.vmem [#allocation5], %s246
        %v248 = vld [vmem:[%s247] sm:$0xf]
        %v249 = vld [vmem:[%s247 + $0x4] sm:$0xf]
        %v250 = vld [vmem:[%s247 + $0x8] sm:$0xf]
        %v251 = vld [vmem:[%s247 + $0xc] sm:$0xf]
        %v252 = vld [vmem:[%s247 + $0x10] sm:$0xf]
        %v253 = vld [vmem:[%s247 + $0x14] sm:$0xf]
        %v254 = vld [vmem:[%s247 + $0x18] sm:$0xf]
        %v255 = vld [vmem:[%s247 + $0x1c] sm:$0xf]
        %v256 = vld [vmem:[%s247 + $0x20] sm:$0xf]
        %v257 = vld [vmem:[%s247 + $0x24] sm:$0xf]
        %v258 = vld [vmem:[%s247 + $0x28] sm:$0xf]
        %v259 = vld [vmem:[%s247 + $0x2c] sm:$0xf]
        %v260 = vld [vmem:[%s247 + $0x30] sm:$0xf]
        %v261 = vld [vmem:[%s247 + $0x34] sm:$0xf]
        %v262 = vld [vmem:[%s247 + $0x38] sm:$0xf]
        %v263 = vld [vmem:[%s247 + $0x3c] sm:$0xf]
        %v264 = vld [vmem:[%s196] sm:$0xff]
        %v265 = vld [vmem:[%s196 + $0x8] sm:$0xff]
        %v266 = vld [vmem:[%s196 + $0x10] sm:$0xff]
        %v267 = vld [vmem:[%s196 + $0x18] sm:$0xff]
        %v268 = vld [vmem:[%s196 + $0x20] sm:$0xff]
        %v269 = vld [vmem:[%s196 + $0x28] sm:$0xff]
        %v270 = vld [vmem:[%s196 + $0x30] sm:$0xff]
        %v271 = vld [vmem:[%s196 + $0x38] sm:$0xff]
        %v272 = vld [vmem:[%s196 + $0x40] sm:$0xff]
        %v273 = vld [vmem:[%s196 + $0x48] sm:$0xff]
        %v274 = vld [vmem:[%s196 + $0x50] sm:$0xff]
        %v275 = vld [vmem:[%s196 + $0x58] sm:$0xff]
        %v276 = vld [vmem:[%s196 + $0x60] sm:$0xff]
        %v277 = vld [vmem:[%s196 + $0x68] sm:$0xff]
        %v278 = vld [vmem:[%s196 + $0x70] sm:$0xff]
        %v279 = vld [vmem:[%s196 + $0x78] sm:$0xff]
        %v296 = vunpack.c.l.b16 %v248
        %v297 = vunpack.c.l.b16 %v249
        %v298 = vunpack.c.l.b16 %v250
        %v299 = vunpack.c.l.b16 %v251
        %v300 = vunpack.c.l.b16 %v252
        %v301 = vunpack.c.l.b16 %v253
        %v302 = vunpack.c.l.b16 %v254
        %v303 = vunpack.c.l.b16 %v255
        %v304 = vunpack.c.l.b16 %v256
        %v305 = vunpack.c.l.b16 %v257
        %v306 = vunpack.c.l.b16 %v258
        %v307 = vunpack.c.l.b16 %v259
        %v308 = vunpack.c.l.b16 %v260
        %v309 = vunpack.c.l.b16 %v261
        %v310 = vunpack.c.l.b16 %v262
        %v311 = vunpack.c.l.b16 %v263
        %v312 = vpack.c.b16 %v297, %v296
        %v313 = vpack.c.b16 %v299, %v298
        %v314 = vpack.c.b16 %v301, %v300
        %v315 = vpack.c.b16 %v303, %v302
        %v316 = vpack.c.b16 %v305, %v304
        %v317 = vpack.c.b16 %v307, %v306
        %v318 = vpack.c.b16 %v309, %v308
        %v319 = vpack.c.b16 %v311, %v310
        %328 = vmatpush.bf16.msra.mxu0 %v319
        %329 = vmatpush.bf16.msra.mxu0 %v318
        %330 = vmatpush.bf16.msra.mxu0 %v317
        %331 = vmatpush.bf16.msra.mxu0 %v316
        %332 = vmatpush.bf16.msra.mxu0 %v315
        %333 = vmatpush.bf16.msra.mxu0 %v314
        %334 = vmatpush.bf16.msra.mxu0 %v313
        %335 = vmatpush.bf16.msra.mxu0 %v312
        %336 = vmatmul.bf16.gmra.mxu0 %v236
        %v337 = vpop.f32.mrf.mxu0
        %v338 = vadd.f32 0.0, %v337
        %v339 = vpop.f32.mrf.mxu0
        %v340 = vadd.f32 0.0, %v339
        %341 = vmatmul.bf16.gmra.mxu0 %v237
        %v342 = vpop.f32.mrf.mxu0
        %v343 = vadd.f32 0.0, %v342
        %v344 = vpop.f32.mrf.mxu0
        %v345 = vadd.f32 0.0, %v344
        %346 = vmatmul.bf16.gmra.mxu0 %v238
        %v347 = vpop.f32.mrf.mxu0
        %v348 = vadd.f32 0.0, %v347
        %v349 = vpop.f32.mrf.mxu0
        %v350 = vadd.f32 0.0, %v349
        %351 = vmatmul.bf16.gmra.mxu0 %v239
        %v352 = vpop.f32.mrf.mxu0
        %v353 = vadd.f32 0.0, %v352
        %v354 = vpop.f32.mrf.mxu0
        %v355 = vadd.f32 0.0, %v354
        %356 = vmatmul.bf16.gmra.mxu0 %v240
        %v357 = vpop.f32.mrf.mxu0
        %v358 = vadd.f32 0.0, %v357
        %v359 = vpop.f32.mrf.mxu0
        %v360 = vadd.f32 0.0, %v359
        %361 = vmatmul.bf16.gmra.mxu0 %v241
        %v362 = vpop.f32.mrf.mxu0
        %v363 = vadd.f32 0.0, %v362
        %v364 = vpop.f32.mrf.mxu0
        %v365 = vadd.f32 0.0, %v364
        %366 = vmatmul.bf16.gmra.mxu0 %v242
        %v367 = vpop.f32.mrf.mxu0
        %v368 = vadd.f32 0.0, %v367
        %v369 = vpop.f32.mrf.mxu0
        %v370 = vadd.f32 0.0, %v369
        %371 = vmatmul.bf16.gmra.mxu0 %v243
        %v372 = vpop.f32.mrf.mxu0
        %v373 = vadd.f32 0.0, %v372
        %v374 = vpop.f32.mrf.mxu0
        %v375 = vadd.f32 0.0, %v374
        %376 = vdwg.mxu0
        %v377 = vadd.f32 %v264, %v338
        %v378 = vadd.f32 %v265, %v340
        %v379 = vadd.f32 %v266, %v343
        %v380 = vadd.f32 %v267, %v345
        %v381 = vadd.f32 %v268, %v348
        %v382 = vadd.f32 %v269, %v350
        %v383 = vadd.f32 %v270, %v353
        %v384 = vadd.f32 %v271, %v355
        %v385 = vadd.f32 %v272, %v358
        %v386 = vadd.f32 %v273, %v360
        %v387 = vadd.f32 %v274, %v363
        %v388 = vadd.f32 %v275, %v365
        %v389 = vadd.f32 %v276, %v368
        %v390 = vadd.f32 %v277, %v370
        %v391 = vadd.f32 %v278, %v373
        %v392 = vadd.f32 %v279, %v375
        %393 = vst [vmem:[%s196] sm:$0xff] %v377
        %394 = vst [vmem:[%s196 + $0x8] sm:$0xff] %v378
        %395 = vst [vmem:[%s196 + $0x10] sm:$0xff] %v379
        %396 = vst [vmem:[%s196 + $0x18] sm:$0xff] %v380
        %397 = vst [vmem:[%s196 + $0x20] sm:$0xff] %v381
        %398 = vst [vmem:[%s196 + $0x28] sm:$0xff] %v382
        %399 = vst [vmem:[%s196 + $0x30] sm:$0xff] %v383
        %400 = vst [vmem:[%s196 + $0x38] sm:$0xff] %v384
        %401 = vst [vmem:[%s196 + $0x40] sm:$0xff] %v385
        %402 = vst [vmem:[%s196 + $0x48] sm:$0xff] %v386
        %403 = vst [vmem:[%s196 + $0x50] sm:$0xff] %v387
        %404 = vst [vmem:[%s196 + $0x58] sm:$0xff] %v388
        %405 = vst [vmem:[%s196 + $0x60] sm:$0xff] %v389
        %406 = vst [vmem:[%s196 + $0x68] sm:$0xff] %v390
        %407 = vst [vmem:[%s196 + $0x70] sm:$0xff] %v391
        %408 = vst [vmem:[%s196 + $0x78] sm:$0xff] %v392
        %p409 = scmp.eq.s32.totalorder %s25, 1
        // Predicated region
        $region41: #{tpu_custom_call.1} parent=27 // pred_check
          %p410 = pneg %p409
        $region42: #{tpu_custom_call.1} parent=27 // pred_check_branch
          %412 = sbr.rel (%p410) target = $region44
        $region43: #{tpu_custom_call.1} parent=27 // pred_region
          %v413 = vld [vmem:[%s196] sm:$0xff]
          %v414 = vld [vmem:[%s196 + $0x8] sm:$0xff]
          %v415 = vld [vmem:[%s196 + $0x10] sm:$0xff]
          %v416 = vld [vmem:[%s196 + $0x18] sm:$0xff]
          %v417 = vld [vmem:[%s196 + $0x20] sm:$0xff]
          %v418 = vld [vmem:[%s196 + $0x28] sm:$0xff]
          %v419 = vld [vmem:[%s196 + $0x30] sm:$0xff]
          %v420 = vld [vmem:[%s196 + $0x38] sm:$0xff]
          %v421 = vld [vmem:[%s196 + $0x40] sm:$0xff]
          %v422 = vld [vmem:[%s196 + $0x48] sm:$0xff]
          %v423 = vld [vmem:[%s196 + $0x50] sm:$0xff]
          %v424 = vld [vmem:[%s196 + $0x58] sm:$0xff]
          %v425 = vld [vmem:[%s196 + $0x60] sm:$0xff]
          %v426 = vld [vmem:[%s196 + $0x68] sm:$0xff]
          %v427 = vld [vmem:[%s196 + $0x70] sm:$0xff]
          %v428 = vld [vmem:[%s196 + $0x78] sm:$0xff]
          %v429 = vmax.f32 %v413, 0.0
          %v430 = vmax.f32 %v414, 0.0
          %v431 = vmax.f32 %v415, 0.0
          %v432 = vmax.f32 %v416, 0.0
          %v433 = vmax.f32 %v417, 0.0
          %v434 = vmax.f32 %v418, 0.0
          %v435 = vmax.f32 %v419, 0.0
          %v436 = vmax.f32 %v420, 0.0
          %v437 = vmax.f32 %v421, 0.0
          %v438 = vmax.f32 %v422, 0.0
          %v439 = vmax.f32 %v423, 0.0
          %v440 = vmax.f32 %v424, 0.0
          %v441 = vmax.f32 %v425, 0.0
          %v442 = vmax.f32 %v426, 0.0
          %v443 = vmax.f32 %v427, 0.0
          %v444 = vmax.f32 %v428, 0.0
          %445 = vst [vmem:[%s196] sm:$0xff] %v429
          %446 = vst [vmem:[%s196 + $0x8] sm:$0xff] %v430
          %447 = vst [vmem:[%s196 + $0x10] sm:$0xff] %v431
          %448 = vst [vmem:[%s196 + $0x18] sm:$0xff] %v432
          %449 = vst [vmem:[%s196 + $0x20] sm:$0xff] %v433
          %450 = vst [vmem:[%s196 + $0x28] sm:$0xff] %v434
          %451 = vst [vmem:[%s196 + $0x30] sm:$0xff] %v435
          %452 = vst [vmem:[%s196 + $0x38] sm:$0xff] %v436
          %453 = vst [vmem:[%s196 + $0x40] sm:$0xff] %v437
          %454 = vst [vmem:[%s196 + $0x48] sm:$0xff] %v438
          %455 = vst [vmem:[%s196 + $0x50] sm:$0xff] %v439
          %456 = vst [vmem:[%s196 + $0x58] sm:$0xff] %v440
          %457 = vst [vmem:[%s196 + $0x60] sm:$0xff] %v441
          %458 = vst [vmem:[%s196 + $0x68] sm:$0xff] %v442
          %459 = vst [vmem:[%s196 + $0x70] sm:$0xff] %v443
          %460 = vst [vmem:[%s196 + $0x78] sm:$0xff] %v444
        $region44: #{tpu_custom_call.1} parent=27 // pred_fallthru
          _
        %s461 = sand.u32 %s89, 1
        %s462 = scalar_lea.sflag [#allocation4], %s461
        %s463 = sand.u32 %s89, 1
        %s464 = smul.addr %s463, 128
        %s465 = scalar_lea.vmem [#allocation7], %s464
        // Predicated region
        $region45: #{tpu_custom_call.1} parent=27 // pred_check
          %p466 = pneg %p99
        $region46: #{tpu_custom_call.1} parent=27 // pred_check_branch
          %468 = sbr.rel (%p466) target = $region48
        $region47: #{tpu_custom_call.1} parent=27 // pred_region
          %s469 = smul.u32 16, %s24
          %471 = vsyncadd %s462, 0
          %s472 = smul.addr %s469, 8
          %s473 = scalar_lea.hbm %s2, %s472
          %s474 = sshll.u32 %s465, 4
          %s475 = int_to_ptr.vmem [resolvable:$true] %s474
          %s476 = sshll.u32 %s473, 4
          %s477 = int_to_ptr.hbm [resolvable:$true] %s476
          %482 = dma.vmem_to_hbm [thread:$0]  %s475, 2048, %s477, %s462, 128, 128, 8
        $region48: #{tpu_custom_call.1} parent=27 // pred_fallthru
          _
      $region28: #{tpu_custom_call.1} parent=5 // pred_fallthru
        _
      %p483 = scmp.le.s32.totalorder 2, %s15
      // Predicated region
      $region49: #{tpu_custom_call.1} parent=5 // pred_check
        %p484 = pneg %p483
      $region50: #{tpu_custom_call.1} parent=5 // pred_check_branch
        %486 = sbr.rel (%p484) target = $region52
      $region51: #{tpu_custom_call.1} parent=5 // pred_region
        %s487 = ssub.s32 %s15, 2
        // Predicated region
        $region53: #{tpu_custom_call.1} parent=51 // pred_check
          %p488 = pneg %p105
        $region54: #{tpu_custom_call.1} parent=51 // pred_check_branch
          %490 = sbr.rel (%p488) target = $region56
        $region55: #{tpu_custom_call.1} parent=51 // pred_region
          %s491 = sand.u32 %s90, 1
          %s492 = scalar_lea.sflag [#allocation4], %s491
          %s493 = sand.u32 %s90, 1
          %s494 = smul.addr %s493, 128
          %s495 = scalar_lea.vmem [#allocation7], %s494
          %497 = dma.done %s492, 2048
        $region56: #{tpu_custom_call.1} parent=51 // pred_fallthru
          _
      $region52: #{tpu_custom_call.1} parent=5 // pred_fallthru
        _
    $region6: #{tpu_custom_call.1} parent=1 // loop_footer
      %s19 = sadd.s32 1, %s15
    $region7: #{tpu_custom_call.1} parent=1 // loop_footer_branch
      %14 = sbr.rel target = $region3
    $region8: #{tpu_custom_call.1} parent=1 // loop_exit
      _
    %498 = vsyncpa [#allocation3], 1
    %s499 = scalar_lea.sflag [#allocation3], 1
    %500 = vsyncpa %s499, 1
    %501 = vsyncpa [#allocation6], 1
    %502 = vsyncpa [#allocation4], 1
    %s503 = scalar_lea.sflag [#allocation4], 1
    %504 = vsyncpa %s503, 1

</llo_original>
